<compile_context>
chip_gen: v6e
topology: v6e:2x2x1
jax: 0.10.0
libtpu: 0.0.40
codegen_flags: <defaults>
</compile_context>

<pallas_src>
import jax
import jax.numpy as jnp
from jax.experimental import pallas as pl
from jax.experimental.pallas import tpu as pltpu

IN_FEATURES = 28 * 28   # 784
OUT_FEATURES = 10


def _round_up(x, m):
    return ((x + m - 1) // m) * m


def _default_max_tile():
    """Largest batch tile whose double-buffered, lane-padded tiles fit the
    default scoped-VMEM limit of the current generation.

    f32 accounting (lane-padded): X block (TB, 896), out block (TB, 128),
    resident W ~0.8 MiB => 2*TB*(896+128)*4 B + ~1 MiB.
      TB=1024 -> ~9 MiB  (fits v5e's 16 MiB default)
      TB=2048 -> ~18 MiB (fits v6e/v7x's 32 MiB default; v7x physical = 64 MiB)
    """
    try:
        kind = jax.devices()[0].device_kind.lower()
    except Exception:
        kind = ""
    if ("v6" in kind) or ("v7" in kind) or ("7x" in kind):
        return 2048
    return 1024


def netlin_kernel(x_ref, w_ref, b_ref, o_ref):
    # x_ref: (TB, 784)   w_ref: (784, 10)   b_ref: (1, 10)   o_ref: (TB, 10)
    logits = jnp.dot(x_ref[...], w_ref[...],
                     preferred_element_type=jnp.float32)          # MXU, f32 acc
    logits = logits + b_ref[...]                                  # (TB, 10)

    # Numerically-stable log_softmax along dim=1 (last axis).
    m = jnp.max(logits, axis=-1, keepdims=True)                   # XLU row-max
    shifted = logits - m
    p = jnp.exp(shifted)                                          # EUP
    # Row-sum on the (otherwise idle) MXU instead of a second XLU reduce:
    ones = jnp.ones((OUT_FEATURES, 1), jnp.float32)
    s = jnp.dot(p, ones, preferred_element_type=jnp.float32)      # (TB, 1)
    o_ref[...] = (shifted - jnp.log(s)).astype(o_ref.dtype)


def netlin_forward(x_nchw, weight, bias, *, max_tile=None):
    """x_nchw: (B, 1, 28, 28). weight: (784, 10) (= PyTorch weight.T). bias: (10,)."""
    B = x_nchw.shape[0]
    x_flat = x_nchw.reshape(B, IN_FEATURES)      # glue reshape (== x.view(-1, 784))
    b2d = bias.reshape(1, OUT_FEATURES)          # 2D for TPU layout

    if max_tile is None:
        max_tile = _default_max_tile()

    # Batch tile:
    #  * multiple of 16 (covers f32 and bf16 sublane tiles),
    #  * capped per-generation (VMEM budget above),
    #  * capped at ~B/2 so large batches yield >=2 grid steps (v7x megacore
    #    shards the "parallel" axis across both TensorCores, and >=2 steps is
    #    what makes the double-buffered DMA pipeline overlap at all).
    TB = max(16, min(max_tile, _round_up(pl.cdiv(B, 2), 16)))
    num_steps = pl.cdiv(B, TB)   # final block may be partial: reads are
                                 # clamped, OOB output writes are masked.

    itemsize = x_flat.dtype.itemsize
    cost = pl.CostEstimate(
        flops=2 * B * IN_FEATURES * OUT_FEATURES,
        transcendentals=B * OUT_FEATURES,
        bytes_accessed=(B * IN_FEATURES * itemsize
                        + IN_FEATURES * OUT_FEATURES * weight.dtype.itemsize
                        + B * OUT_FEATURES * 4),
    )

    out = pl.pallas_call(
        netlin_kernel,
        out_shape=jax.ShapeDtypeStruct((B, OUT_FEATURES), jnp.float32),
        grid=(num_steps,),
        in_specs=[
            pl.BlockSpec((TB, IN_FEATURES), lambda i: (i, 0)),            # X: tiled
            pl.BlockSpec((IN_FEATURES, OUT_FEATURES), lambda i: (0, 0)),  # W: resident
            pl.BlockSpec((1, OUT_FEATURES), lambda i: (0, 0)),            # b: resident
        ],
        out_specs=pl.BlockSpec((TB, OUT_FEATURES), lambda i: (i, 0)),
        compiler_params=pltpu.CompilerParams(
            dimension_semantics=("parallel",),   # rows independent -> v7x megacore
        ),
        cost_estimate=cost,
    )(x_flat, weight, b2d)

    return out


def _reference(x_nchw, weight, bias):
    logits = x_nchw.reshape(x_nchw.shape[0], -1) @ weight + bias
    return jax.nn.log_softmax(logits, axis=1)


if __name__ == "__main__":
    key = jax.random.PRNGKey(0)
    k_x, k_w, k_b = jax.random.split(key, 3)

    B = 2
    # Deterministic synthetic input, NCHW like the PyTorch MNIST pipeline.
    x = jax.random.normal(k_x, (B, 1, 28, 28), dtype=jnp.float32)

    # Deterministic parameter init mimicking nn.Linear default:
    # uniform(-1/sqrt(in_features), 1/sqrt(in_features)).
    bound = 1.0 / jnp.sqrt(jnp.float32(IN_FEATURES))
    weight = jax.random.uniform(k_w, (IN_FEATURES, OUT_FEATURES),
                                jnp.float32, -bound, bound)
    bias = jax.random.uniform(k_b, (OUT_FEATURES,), jnp.float32, -bound, bound)

    out = netlin_forward(x, weight, bias)
    out = jax.block_until_ready(out)

    ref = _reference(x, weight, bias)
    assert out.shape == (B, OUT_FEATURES)
    assert jnp.allclose(out, ref, atol=1e-5, rtol=1e-5)

    # Batch not a multiple of 16 (single partial block).
    B2 = 13
    x2 = jax.random.normal(jax.random.PRNGKey(1), (B2, 1, 28, 28), jnp.float32)
    out2 = jax.block_until_ready(netlin_forward(x2, weight, bias))
    assert out2.shape == (B2, OUT_FEATURES)
    assert jnp.allclose(out2, _reference(x2, weight, bias), atol=1e-5, rtol=1e-5)

    # Multi-step grid with a partial FINAL block (40 = 2*16 + 8): exercises the
    # masked-write path that replaced the wrapper-side jnp.pad.
    B3 = 40
    x3 = jax.random.normal(jax.random.PRNGKey(2), (B3, 1, 28, 28), jnp.float32)
    out3 = jax.block_until_ready(netlin_forward(x3, weight, bias, max_tile=16))
    assert out3.shape == (B3, OUT_FEATURES)
    assert jnp.allclose(out3, _reference(x3, weight, bias), atol=1e-5, rtol=1e-5)

    print("KERNEL_OK")
</pallas_src>

<mosaic_0001>
module attributes {stable_mosaic.version = 11 : i64} {
  func.func @netlin_kernel(%arg0: i32, %arg1: memref<16x784xf32, #tpu.memory_space<vmem>>, %arg2: memref<784x10xf32, #tpu.memory_space<vmem>>, %arg3: memref<1x10xf32, #tpu.memory_space<vmem>>, %arg4: memref<16x10xf32, #tpu.memory_space<vmem>>) attributes {dimension_semantics = [#tpu.dimension_semantics<parallel>], iteration_bounds = array<i64: 1>, scalar_prefetch = 0 : i64, scratch_operands = 0 : i64, tpu.core_type = #tpu.core_type<tc>, window_params = [{transform_indices = @transform_0, window_bounds = array<i64: 16, 784>}, {pipeline_mode = #tpu.pipeline_mode<synchronous>, transform_indices = @transform_1, window_bounds = array<i64: 784, 10>}, {pipeline_mode = #tpu.pipeline_mode<synchronous>, transform_indices = @transform_2, window_bounds = array<i64: 1, 10>}, {transform_indices = @transform_3, window_bounds = array<i64: 16, 10>}]} {
    %c0 = arith.constant 0 : index
    %c0_0 = arith.constant 0 : index
    %0 = vector.load %arg1[%c0, %c0_0] : memref<16x784xf32, #tpu.memory_space<vmem>>, vector<16x784xf32>
    %c0_1 = arith.constant 0 : index
    %c0_2 = arith.constant 0 : index
    %1 = vector.load %arg2[%c0_1, %c0_2] : memref<784x10xf32, #tpu.memory_space<vmem>>, vector<784x10xf32>
    %cst = arith.constant dense<0.000000e+00> : vector<16x10xf32>
    %2 = tpu.matmul %0, %1, %cst {dimension_numbers = #tpu.dot_dimension_numbers<[1], [0], [0], [1], [0, 0, 1, 1], [], []>} : vector<16x784xf32>, vector<784x10xf32>, vector<16x10xf32> -> vector<16x10xf32>
    %c0_3 = arith.constant 0 : index
    %c0_4 = arith.constant 0 : index
    %3 = vector.load %arg3[%c0_3, %c0_4] : memref<1x10xf32, #tpu.memory_space<vmem>>, vector<1x10xf32>
    %4 = vector.broadcast %3 : vector<1x10xf32> to vector<16x10xf32>
    %5 = arith.addf %2, %4 : vector<16x10xf32>
    %cst_5 = arith.constant dense<0xFF800000> : vector<16xf32>
    %6 = vector.multi_reduction <maximumf>, %5, %cst_5 [1] : vector<16x10xf32> to vector<16xf32>
    %7 = vector.shape_cast %6 : vector<16xf32> to vector<16x1xf32>
    %8 = vector.broadcast %7 : vector<16x1xf32> to vector<16x10xf32>
    %9 = arith.subf %5, %8 : vector<16x10xf32>
    %10 = math.exp %9 : vector<16x10xf32>
    %cst_6 = arith.constant 1.000000e+00 : f32
    %11 = vector.broadcast %cst_6 : f32 to vector<10x1xf32>
    %cst_7 = arith.constant dense<0.000000e+00> : vector<16x1xf32>
    %12 = tpu.matmul %10, %11, %cst_7 {dimension_numbers = #tpu.dot_dimension_numbers<[1], [0], [0], [1], [0, 0, 1, 1], [], []>} : vector<16x10xf32>, vector<10x1xf32>, vector<16x1xf32> -> vector<16x1xf32>
    %13 = math.log %12 : vector<16x1xf32>
    %14 = vector.broadcast %13 : vector<16x1xf32> to vector<16x10xf32>
    %15 = arith.subf %9, %14 : vector<16x10xf32>
    %c0_8 = arith.constant 0 : index
    %c0_9 = arith.constant 0 : index
    %16 = vector.load %arg4[%c0_8, %c0_9] : memref<16x10xf32, #tpu.memory_space<vmem>>, vector<16x10xf32>
    tpu.vector_store %arg4[%c0_8, %c0_9], %15 {strides = array<i32>} : memref<16x10xf32, #tpu.memory_space<vmem>>, vector<16x10xf32>,
    return
  }
  func.func @transform_0(%arg0: i32) -> (i32, i32) {
    %c0_i32 = arith.constant 0 : i32
    %c0_i32_0 = arith.constant 0 : i32
    return %arg0, %c0_i32 : i32, i32
  }
  func.func @transform_1(%arg0: i32) -> (i32, i32) {
    %c0_i32 = arith.constant 0 : i32
    %c0_i32_0 = arith.constant 0 : i32
    %c0_i32_1 = arith.constant 0 : i32
    return %c0_i32, %c0_i32_0 : i32, i32
  }
  func.func @transform_2(%arg0: i32) -> (i32, i32) {
    %c0_i32 = arith.constant 0 : i32
    %c0_i32_0 = arith.constant 0 : i32
    %c0_i32_1 = arith.constant 0 : i32
    return %c0_i32, %c0_i32_0 : i32, i32
  }
  func.func @transform_3(%arg0: i32) -> (i32, i32) {
    %c0_i32 = arith.constant 0 : i32
    %c0_i32_0 = arith.constant 0 : i32
    return %arg0, %c0_i32 : i32, i32
  }
}

</mosaic_0001>

<llo_original>
// kernel: tpu_custom_call.1
$region0: #{tpu_custom_call.1}
  #allocation0 [shape = 'u32[]', space=smem, size = 0x4, offset = 0x4, fixed_abs, tag = 'smem constant byte address 0x4 - core index']
  #allocation1 [shape = 'u32[144,128]{1,0:T(1,128)}', space=vmem, size = 0x12000, scoped, tag = 'internal scratch']
  %s0 = inlined_call_operand.vmem [shape: f32[2,784], index: 0, kind: input, shape index: {}]
  %s1 = inlined_call_operand.vmem [shape: f32[784,10], index: 1, kind: input, shape index: {}]
  %s2 = inlined_call_operand.vmem [shape: f32[1,10], index: 2, kind: input, shape index: {}]
  %s3 = inlined_call_operand.hbm [shape: f32[2,10], index: 3, kind: output, shape index: {}]
  %s4 = sld [smem:[#allocation0]]
  $region22: #{tpu_custom_call.1} parent=0
    _
  %s6 = ssub.s32 1, %s4
  %s7 = scalar_select 0, %s6, %s4
  $region1: #{tpu_custom_call.1} parent=0
    #allocation2 [shape = 'u8[8192]{0}', space=vmem, size = 0x2000, scoped, tag = 'output window, operand 0, single buffered']
    #allocation3 [shape = 's32[1]{0}', space=sflag, size = 0x4, scoped, tag = 'scoped memory for tpu_custom_call.1']
    %8 = vsyncpa [#allocation3], 0
    // Predicated region
    $region2: #{tpu_custom_call.1} parent=1 // pred_check
      _
    $region3: #{tpu_custom_call.1} parent=1 // pred_check_branch
      %10 = sbr.rel (0) target = $region5
    $region4: #{tpu_custom_call.1} parent=1 // pred_region
      _
    $region5: #{tpu_custom_call.1} parent=1 // pred_fallthru
      _
    // Predicated region
    $region6: #{tpu_custom_call.1} parent=1 // pred_check
      _
    $region7: #{tpu_custom_call.1} parent=1 // pred_check_branch
      %12 = sbr.rel (0) target = $region9
    $region8: #{tpu_custom_call.1} parent=1 // pred_region
      _
    $region9: #{tpu_custom_call.1} parent=1 // pred_fallthru
      _
    // Predicated region
    $region10: #{tpu_custom_call.1} parent=1 // pred_check
      _
    $region11: #{tpu_custom_call.1} parent=1 // pred_check_branch
      %14 = sbr.rel (0) target = $region13
    $region12: #{tpu_custom_call.1} parent=1 // pred_region
      _
    $region13: #{tpu_custom_call.1} parent=1 // pred_fallthru
      _
    %v15 = vld [vmem:[%s0] sm:$0xff]
    %v16 = vld [vmem:[%s0 + $0x8] sm:$0x3f]
    %v17 = vld [vmem:[%s0 + $0xe] sm:$0xff]
    %v18 = vld [vmem:[%s0 + $0x16] sm:$0x3f]
    %v19 = vld [vmem:[%s0 + $0x1c] sm:$0xff]
    %v20 = vld [vmem:[%s0 + $0x24] sm:$0x3f]
    %v21 = vld [vmem:[%s0 + $0x2a] sm:$0xff]
    %v22 = vld [vmem:[%s0 + $0x32] sm:$0x3f]
    %v23 = vld [vmem:[%s0 + $0x38] sm:$0xff]
    %v24 = vld [vmem:[%s0 + $0x40] sm:$0x3f]
    %v25 = vld [vmem:[%s0 + $0x46] sm:$0xff]
    %v26 = vld [vmem:[%s0 + $0x4e] sm:$0x3f]
    %v27 = vld [vmem:[%s0 + $0x54] sm:$0xff]
    %v28 = vld [vmem:[%s0 + $0x5c] sm:$0x3f]
    %v29 = vld [vmem:[%s0 + $0x62] sm:$0xff]
    %v30 = vld [vmem:[%s0 + $0x6a] sm:$0x3f]
    %v31 = vld [vmem:[%s1] sm:$0xff]
    %v32 = vld [vmem:[%s1 + $0x8] sm:$0xff]
    %v33 = vld [vmem:[%s1 + $0x10] sm:$0xff]
    %v34 = vld [vmem:[%s1 + $0x18] sm:$0xff]
    %v35 = vld [vmem:[%s1 + $0x20] sm:$0xff]
    %v36 = vld [vmem:[%s1 + $0x28] sm:$0xff]
    %v37 = vld [vmem:[%s1 + $0x30] sm:$0xff]
    %v38 = vld [vmem:[%s1 + $0x38] sm:$0xff]
    %v39 = vld [vmem:[%s1 + $0x40] sm:$0xff]
    %v40 = vld [vmem:[%s1 + $0x48] sm:$0xff]
    %v41 = vld [vmem:[%s1 + $0x50] sm:$0xff]
    %v42 = vld [vmem:[%s1 + $0x58] sm:$0xff]
    %v43 = vld [vmem:[%s1 + $0x60] sm:$0xff]
    %v44 = vld [vmem:[%s1 + $0x68] sm:$0xff]
    %v45 = vld [vmem:[%s1 + $0x70] sm:$0xff]
    %v46 = vld [vmem:[%s1 + $0x78] sm:$0xff]
    %v47 = vld [vmem:[%s1 + $0x80] sm:$0xff]
    %v48 = vld [vmem:[%s1 + $0x88] sm:$0xff]
    %v49 = vld [vmem:[%s1 + $0x90] sm:$0xff]
    %v50 = vld [vmem:[%s1 + $0x98] sm:$0xff]
    %v51 = vld [vmem:[%s1 + $0xa0] sm:$0xff]
    %v52 = vld [vmem:[%s1 + $0xa8] sm:$0xff]
    %v53 = vld [vmem:[%s1 + $0xb0] sm:$0xff]
    %v54 = vld [vmem:[%s1 + $0xb8] sm:$0xff]
    %v55 = vld [vmem:[%s1 + $0xc0] sm:$0xff]
    %v56 = vld [vmem:[%s1 + $0xc8] sm:$0xff]
    %v57 = vld [vmem:[%s1 + $0xd0] sm:$0xff]
    %v58 = vld [vmem:[%s1 + $0xd8] sm:$0xff]
    %v59 = vld [vmem:[%s1 + $0xe0] sm:$0xff]
    %v60 = vld [vmem:[%s1 + $0xe8] sm:$0xff]
    %v61 = vld [vmem:[%s1 + $0xf0] sm:$0xff]
    %v62 = vld [vmem:[%s1 + $0xf8] sm:$0xff]
    %v63 = vld [vmem:[%s1 + $0x100] sm:$0xff]
    %v64 = vld [vmem:[%s1 + $0x108] sm:$0xff]
    %v65 = vld [vmem:[%s1 + $0x110] sm:$0xff]
    %v66 = vld [vmem:[%s1 + $0x118] sm:$0xff]
    %v67 = vld [vmem:[%s1 + $0x120] sm:$0xff]
    %v68 = vld [vmem:[%s1 + $0x128] sm:$0xff]
    %v69 = vld [vmem:[%s1 + $0x130] sm:$0xff]
    %v70 = vld [vmem:[%s1 + $0x138] sm:$0xff]
    %v71 = vld [vmem:[%s1 + $0x140] sm:$0xff]
    %v72 = vld [vmem:[%s1 + $0x148] sm:$0xff]
    %v73 = vld [vmem:[%s1 + $0x150] sm:$0xff]
    %v74 = vld [vmem:[%s1 + $0x158] sm:$0xff]
    %v75 = vld [vmem:[%s1 + $0x160] sm:$0xff]
    %v76 = vld [vmem:[%s1 + $0x168] sm:$0xff]
    %v77 = vld [vmem:[%s1 + $0x170] sm:$0xff]
    %v78 = vld [vmem:[%s1 + $0x178] sm:$0xff]
    %v79 = vld [vmem:[%s1 + $0x180] sm:$0xff]
    %v80 = vld [vmem:[%s1 + $0x188] sm:$0xff]
    %v81 = vld [vmem:[%s1 + $0x190] sm:$0xff]
    %v82 = vld [vmem:[%s1 + $0x198] sm:$0xff]
    %v83 = vld [vmem:[%s1 + $0x1a0] sm:$0xff]
    %v84 = vld [vmem:[%s1 + $0x1a8] sm:$0xff]
    %v85 = vld [vmem:[%s1 + $0x1b0] sm:$0xff]
    %v86 = vld [vmem:[%s1 + $0x1b8] sm:$0xff]
    %v87 = vld [vmem:[%s1 + $0x1c0] sm:$0xff]
    %v88 = vld [vmem:[%s1 + $0x1c8] sm:$0xff]
    %v89 = vld [vmem:[%s1 + $0x1d0] sm:$0xff]
    %v90 = vld [vmem:[%s1 + $0x1d8] sm:$0xff]
    %v91 = vld [vmem:[%s1 + $0x1e0] sm:$0xff]
    %v92 = vld [vmem:[%s1 + $0x1e8] sm:$0xff]
    %v93 = vld [vmem:[%s1 + $0x1f0] sm:$0xff]
    %v94 = vld [vmem:[%s1 + $0x1f8] sm:$0xff]
    %v95 = vld [vmem:[%s1 + $0x200] sm:$0xff]
    %v96 = vld [vmem:[%s1 + $0x208] sm:$0xff]
    %v97 = vld [vmem:[%s1 + $0x210] sm:$0xff]
    %v98 = vld [vmem:[%s1 + $0x218] sm:$0xff]
    %v99 = vld [vmem:[%s1 + $0x220] sm:$0xff]
    %v100 = vld [vmem:[%s1 + $0x228] sm:$0xff]
    %v101 = vld [vmem:[%s1 + $0x230] sm:$0xff]
    %v102 = vld [vmem:[%s1 + $0x238] sm:$0xff]
    %v103 = vld [vmem:[%s1 + $0x240] sm:$0xff]
    %v104 = vld [vmem:[%s1 + $0x248] sm:$0xff]
    %v105 = vld [vmem:[%s1 + $0x250] sm:$0xff]
    %v106 = vld [vmem:[%s1 + $0x258] sm:$0xff]
    %v107 = vld [vmem:[%s1 + $0x260] sm:$0xff]
    %v108 = vld [vmem:[%s1 + $0x268] sm:$0xff]
    %v109 = vld [vmem:[%s1 + $0x270] sm:$0xff]
    %v110 = vld [vmem:[%s1 + $0x278] sm:$0xff]
    %v111 = vld [vmem:[%s1 + $0x280] sm:$0xff]
    %v112 = vld [vmem:[%s1 + $0x288] sm:$0xff]
    %v113 = vld [vmem:[%s1 + $0x290] sm:$0xff]
    %v114 = vld [vmem:[%s1 + $0x298] sm:$0xff]
    %v115 = vld [vmem:[%s1 + $0x2a0] sm:$0xff]
    %v116 = vld [vmem:[%s1 + $0x2a8] sm:$0xff]
    %v117 = vld [vmem:[%s1 + $0x2b0] sm:$0xff]
    %v118 = vld [vmem:[%s1 + $0x2b8] sm:$0xff]
    %v119 = vld [vmem:[%s1 + $0x2c0] sm:$0xff]
    %v120 = vld [vmem:[%s1 + $0x2c8] sm:$0xff]
    %v121 = vld [vmem:[%s1 + $0x2d0] sm:$0xff]
    %v122 = vld [vmem:[%s1 + $0x2d8] sm:$0xff]
    %v123 = vld [vmem:[%s1 + $0x2e0] sm:$0xff]
    %v124 = vld [vmem:[%s1 + $0x2e8] sm:$0xff]
    %v125 = vld [vmem:[%s1 + $0x2f0] sm:$0xff]
    %v126 = vld [vmem:[%s1 + $0x2f8] sm:$0xff]
    %v127 = vld [vmem:[%s1 + $0x300] sm:$0xff]
    %v128 = vld [vmem:[%s1 + $0x308] sm:$0xff]
    %v129 = vld [vmem:[%s2] sm:$0x1]
    %v131 = vlaneseq
    %v132 = vshrl.u32 %v131, 7
    %v133 = vsub.s32 0, %v132
    %v134 = vrot.slane %v129, %v133
    %v152 = vcombine.low %v15, %v17
    %v153 = vcombine.high %v15, %v17
    %v154 = vcombine.low %v19, %v21
    %v155 = vcombine.high %v19, %v21
    %v157 = vunpack.c.l.s4 1983009808
    %v158 = vunpack.c.0.s8 %v157
    %v159 = vlaneseq
    %v160 = vshrl.u32 %v159, 7
    %v161 = vsub.s32 %v158, %v160
    %v162 = vrot.slane %v152, %v161
    %v164 = vunpack.c.l.s4 1983009808
    %v165 = vunpack.c.0.s8 %v164
    %v166 = vlaneseq
    %v167 = vshrl.u32 %v166, 7
    %v168 = vsub.s32 %v165, %v167
    %v169 = vrot.slane %v153, %v168
    %v171 = vunpack.c.l.s4 1983009808
    %v172 = vunpack.c.0.s8 %v171
    %v173 = vlaneseq
    %v174 = vshrl.u32 %v173, 7
    %v175 = vsub.s32 %v172, %v174
    %v176 = vrot.slane %v154, %v175
    %v178 = vunpack.c.l.s4 1983009808
    %v179 = vunpack.c.0.s8 %v178
    %v180 = vlaneseq
    %v181 = vshrl.u32 %v180, 7
    %v182 = vsub.s32 %v179, %v181
    %v183 = vrot.slane %v155, %v182
    %v184 = vcombine.low %v162, %v176
    %v185 = vcombine.high %v162, %v176
    %v186 = vcombine.low %v169, %v183
    %v187 = vcombine.high %v169, %v183
    %v188 = vcombine.low %v16, %v18
    %v189 = vcombine.high %v16, %v18
    %v190 = vcombine.low %v20, %v22
    %v191 = vcombine.high %v20, %v22
    %v193 = vunpack.c.l.s4 1983009808
    %v194 = vunpack.c.0.s8 %v193
    %v195 = vlaneseq
    %v196 = vshrl.u32 %v195, 7
    %v197 = vsub.s32 %v194, %v196
    %v198 = vrot.slane %v188, %v197
    %v200 = vunpack.c.l.s4 1983009808
    %v201 = vunpack.c.0.s8 %v200
    %v202 = vlaneseq
    %v203 = vshrl.u32 %v202, 7
    %v204 = vsub.s32 %v201, %v203
    %v205 = vrot.slane %v189, %v204
    %v207 = vunpack.c.l.s4 1983009808
    %v208 = vunpack.c.0.s8 %v207
    %v209 = vlaneseq
    %v210 = vshrl.u32 %v209, 7
    %v211 = vsub.s32 %v208, %v210
    %v212 = vrot.slane %v190, %v211
    %v214 = vunpack.c.l.s4 1983009808
    %v215 = vunpack.c.0.s8 %v214
    %v216 = vlaneseq
    %v217 = vshrl.u32 %v216, 7
    %v218 = vsub.s32 %v215, %v217
    %v219 = vrot.slane %v191, %v218
    %v220 = vcombine.low %v198, %v212
    %v221 = vcombine.high %v198, %v212
    %v222 = vcombine.low %v205, %v219
    %v223 = vcombine.low %v23, %v25
    %v224 = vcombine.high %v23, %v25
    %v225 = vcombine.low %v27, %v29
    %v226 = vcombine.high %v27, %v29
    %v228 = vunpack.c.l.s4 1983009808
    %v229 = vunpack.c.0.s8 %v228
    %v230 = vlaneseq
    %v231 = vshrl.u32 %v230, 7
    %v232 = vsub.s32 %v229, %v231
    %v233 = vrot.slane %v223, %v232
    %v235 = vunpack.c.l.s4 1983009808
    %v236 = vunpack.c.0.s8 %v235
    %v237 = vlaneseq
    %v238 = vshrl.u32 %v237, 7
    %v239 = vsub.s32 %v236, %v238
    %v240 = vrot.slane %v224, %v239
    %v242 = vunpack.c.l.s4 1983009808
    %v243 = vunpack.c.0.s8 %v242
    %v244 = vlaneseq
    %v245 = vshrl.u32 %v244, 7
    %v246 = vsub.s32 %v243, %v245
    %v247 = vrot.slane %v225, %v246
    %v249 = vunpack.c.l.s4 1983009808
    %v250 = vunpack.c.0.s8 %v249
    %v251 = vlaneseq
    %v252 = vshrl.u32 %v251, 7
    %v253 = vsub.s32 %v250, %v252
    %v254 = vrot.slane %v226, %v253
    %v255 = vcombine.low %v233, %v247
    %v256 = vcombine.high %v233, %v247
    %v257 = vcombine.low %v240, %v254
    %v258 = vcombine.high %v240, %v254
    %v259 = vcombine.low %v24, %v26
    %v260 = vcombine.high %v24, %v26
    %v261 = vcombine.low %v28, %v30
    %v262 = vcombine.high %v28, %v30
    %v264 = vunpack.c.l.s4 1983009808
    %v265 = vunpack.c.0.s8 %v264
    %v266 = vlaneseq
    %v267 = vshrl.u32 %v266, 7
    %v268 = vsub.s32 %v265, %v267
    %v269 = vrot.slane %v259, %v268
    %v271 = vunpack.c.l.s4 1983009808
    %v272 = vunpack.c.0.s8 %v271
    %v273 = vlaneseq
    %v274 = vshrl.u32 %v273, 7
    %v275 = vsub.s32 %v272, %v274
    %v276 = vrot.slane %v260, %v275
    %v278 = vunpack.c.l.s4 1983009808
    %v279 = vunpack.c.0.s8 %v278
    %v280 = vlaneseq
    %v281 = vshrl.u32 %v280, 7
    %v282 = vsub.s32 %v279, %v281
    %v283 = vrot.slane %v261, %v282
    %v285 = vunpack.c.l.s4 1983009808
    %v286 = vunpack.c.0.s8 %v285
    %v287 = vlaneseq
    %v288 = vshrl.u32 %v287, 7
    %v289 = vsub.s32 %v286, %v288
    %v290 = vrot.slane %v262, %v289
    %v291 = vcombine.low %v269, %v283
    %v292 = vcombine.high %v269, %v283
    %v293 = vcombine.low %v276, %v290
    %vm306 = vcmask 130048
    %v307 = vsel %vm306, %v222, 0
    %v309 = vsel %vm306, %v293, 0
    %311 = vmatprep.subr.mxu0 0.0
    %312 = vmatpush1.msra.mxu0 %v46
    %313 = vmatprep.subr.mxu0 0.0
    %314 = vmatpush1.msra.mxu0 %v45
    %315 = vmatprep.subr.mxu0 0.0
    %316 = vmatpush1.msra.mxu0 %v44
    %317 = vmatprep.subr.mxu0 0.0
    %318 = vmatpush1.msra.mxu0 %v43
    %319 = vmatprep.subr.mxu0 0.0
    %320 = vmatpush1.msra.mxu0 %v42
    %321 = vmatprep.subr.mxu0 0.0
    %322 = vmatpush1.msra.mxu0 %v41
    %323 = vmatprep.subr.mxu0 0.0
    %324 = vmatpush1.msra.mxu0 %v40
    %325 = vmatprep.subr.mxu0 0.0
    %326 = vmatpush1.msra.mxu0 %v39
    %327 = vmatprep.subr.mxu0 0.0
    %328 = vmatpush1.msra.mxu0 %v38
    %329 = vmatprep.subr.mxu0 0.0
    %330 = vmatpush1.msra.mxu0 %v37
    %331 = vmatprep.subr.mxu0 0.0
    %332 = vmatpush1.msra.mxu0 %v36
    %333 = vmatprep.subr.mxu0 0.0
    %334 = vmatpush1.msra.mxu0 %v35
    %335 = vmatprep.subr.mxu0 0.0
    %336 = vmatpush1.msra.mxu0 %v34
    %337 = vmatprep.subr.mxu0 0.0
    %338 = vmatpush1.msra.mxu0 %v33
    %339 = vmatprep.subr.mxu0 0.0
    %340 = vmatpush1.msra.mxu0 %v32
    %341 = vmatprep.subr.mxu0 0.0
    %342 = vmatpush1.msra.mxu0 %v31
    %343 = vmatprep.subr.mxu0 0.0
    %344 = vmatpush2.msra.mxu0 %v62
    %345 = vmatprep.subr.mxu0 0.0
    %346 = vmatpush2.msra.mxu0 %v61
    %347 = vmatprep.subr.mxu0 0.0
    %348 = vmatpush2.msra.mxu0 %v60
    %349 = vmatprep.subr.mxu0 0.0
    %350 = vmatpush2.msra.mxu0 %v59
    %351 = vmatprep.subr.mxu0 0.0
    %352 = vmatpush2.msra.mxu0 %v58
    %353 = vmatprep.subr.mxu0 0.0
    %354 = vmatpush2.msra.mxu0 %v57
    %355 = vmatprep.subr.mxu0 0.0
    %356 = vmatpush2.msra.mxu0 %v56
    %357 = vmatprep.subr.mxu0 0.0
    %358 = vmatpush2.msra.mxu0 %v55
    %359 = vmatprep.subr.mxu0 0.0
    %360 = vmatpush2.msra.mxu0 %v54
    %361 = vmatprep.subr.mxu0 0.0
    %362 = vmatpush2.msra.mxu0 %v53
    %363 = vmatprep.subr.mxu0 0.0
    %364 = vmatpush2.msra.mxu0 %v52
    %365 = vmatprep.subr.mxu0 0.0
    %366 = vmatpush2.msra.mxu0 %v51
    %367 = vmatprep.subr.mxu0 0.0
    %368 = vmatpush2.msra.mxu0 %v50
    %369 = vmatprep.subr.mxu0 0.0
    %370 = vmatpush2.msra.mxu0 %v49
    %371 = vmatprep.subr.mxu0 0.0
    %372 = vmatpush2.msra.mxu0 %v48
    %373 = vmatprep.subr.mxu0 0.0
    %374 = vmatpush2.msra.mxu0 %v47
    %375 = vmatprep.mubr.f32.mxu0 %v185
    %376 = vmatmul.mubr.f32.gmra.mxu0 %v184
    %v377 = vpop.f32.mrf.mxu0
    %v378 = vadd.f32 %v134, %v377
    %v379 = vpop.f32.mrf.mxu0
    %380 = vmatprep.mubr.f32.mxu0 %v256
    %381 = vmatmul.mubr.f32.gmra.mxu0 %v255
    %v382 = vpop.f32.mrf.mxu0
    %v383 = vadd.f32 %v134, %v382
    %v384 = vpop.f32.mrf.mxu0
    %385 = vdwg.mxu0
    %386 = vmatprep.subr.mxu0 0.0
    %387 = vmatpush1.msra.mxu0 %v78
    %388 = vmatprep.subr.mxu0 0.0
    %389 = vmatpush1.msra.mxu0 %v77
    %390 = vmatprep.subr.mxu0 0.0
    %391 = vmatpush1.msra.mxu0 %v76
    %392 = vmatprep.subr.mxu0 0.0
    %393 = vmatpush1.msra.mxu0 %v75
    %394 = vmatprep.subr.mxu0 0.0
    %395 = vmatpush1.msra.mxu0 %v74
    %396 = vmatprep.subr.mxu0 0.0
    %397 = vmatpush1.msra.mxu0 %v73
    %398 = vmatprep.subr.mxu0 0.0
    %399 = vmatpush1.msra.mxu0 %v72
    %400 = vmatprep.subr.mxu0 0.0
    %401 = vmatpush1.msra.mxu0 %v71
    %402 = vmatprep.subr.mxu0 0.0
    %403 = vmatpush1.msra.mxu0 %v70
    %404 = vmatprep.subr.mxu0 0.0
    %405 = vmatpush1.msra.mxu0 %v69
    %406 = vmatprep.subr.mxu0 0.0
    %407 = vmatpush1.msra.mxu0 %v68
    %408 = vmatprep.subr.mxu0 0.0
    %409 = vmatpush1.msra.mxu0 %v67
    %410 = vmatprep.subr.mxu0 0.0
    %411 = vmatpush1.msra.mxu0 %v66
    %412 = vmatprep.subr.mxu0 0.0
    %413 = vmatpush1.msra.mxu0 %v65
    %414 = vmatprep.subr.mxu0 0.0
    %415 = vmatpush1.msra.mxu0 %v64
    %416 = vmatprep.subr.mxu0 0.0
    %417 = vmatpush1.msra.mxu0 %v63
    %418 = vmatprep.subr.mxu0 0.0
    %419 = vmatpush2.msra.mxu0 %v94
    %420 = vmatprep.subr.mxu0 0.0
    %421 = vmatpush2.msra.mxu0 %v93
    %422 = vmatprep.subr.mxu0 0.0
    %423 = vmatpush2.msra.mxu0 %v92
    %424 = vmatprep.subr.mxu0 0.0
    %425 = vmatpush2.msra.mxu0 %v91
    %426 = vmatprep.subr.mxu0 0.0
    %427 = vmatpush2.msra.mxu0 %v90
    %428 = vmatprep.subr.mxu0 0.0
    %429 = vmatpush2.msra.mxu0 %v89
    %430 = vmatprep.subr.mxu0 0.0
    %431 = vmatpush2.msra.mxu0 %v88
    %432 = vmatprep.subr.mxu0 0.0
    %433 = vmatpush2.msra.mxu0 %v87
    %434 = vmatprep.subr.mxu0 0.0
    %435 = vmatpush2.msra.mxu0 %v86
    %436 = vmatprep.subr.mxu0 0.0
    %437 = vmatpush2.msra.mxu0 %v85
    %438 = vmatprep.subr.mxu0 0.0
    %439 = vmatpush2.msra.mxu0 %v84
    %440 = vmatprep.subr.mxu0 0.0
    %441 = vmatpush2.msra.mxu0 %v83
    %442 = vmatprep.subr.mxu0 0.0
    %443 = vmatpush2.msra.mxu0 %v82
    %444 = vmatprep.subr.mxu0 0.0
    %445 = vmatpush2.msra.mxu0 %v81
    %446 = vmatprep.subr.mxu0 0.0
    %447 = vmatpush2.msra.mxu0 %v80
    %448 = vmatprep.subr.mxu0 0.0
    %449 = vmatpush2.msra.mxu0 %v79
    %450 = vmatprep.mubr.f32.mxu0 %v187
    %451 = vmatmul.mubr.f32.gmra.mxu0 %v186
    %v452 = vpop.f32.mrf.mxu0
    %v453 = vadd.f32 %v378, %v452
    %v454 = vpop.f32.mrf.mxu0
    %455 = vmatprep.mubr.f32.mxu0 %v258
    %456 = vmatmul.mubr.f32.gmra.mxu0 %v257
    %v457 = vpop.f32.mrf.mxu0
    %v458 = vadd.f32 %v383, %v457
    %v459 = vpop.f32.mrf.mxu0
    %460 = vdwg.mxu0
    %461 = vmatprep.subr.mxu0 0.0
    %462 = vmatpush1.msra.mxu0 %v110
    %463 = vmatprep.subr.mxu0 0.0
    %464 = vmatpush1.msra.mxu0 %v109
    %465 = vmatprep.subr.mxu0 0.0
    %466 = vmatpush1.msra.mxu0 %v108
    %467 = vmatprep.subr.mxu0 0.0
    %468 = vmatpush1.msra.mxu0 %v107
    %469 = vmatprep.subr.mxu0 0.0
    %470 = vmatpush1.msra.mxu0 %v106
    %471 = vmatprep.subr.mxu0 0.0
    %472 = vmatpush1.msra.mxu0 %v105
    %473 = vmatprep.subr.mxu0 0.0
    %474 = vmatpush1.msra.mxu0 %v104
    %475 = vmatprep.subr.mxu0 0.0
    %476 = vmatpush1.msra.mxu0 %v103
    %477 = vmatprep.subr.mxu0 0.0
    %478 = vmatpush1.msra.mxu0 %v102
    %479 = vmatprep.subr.mxu0 0.0
    %480 = vmatpush1.msra.mxu0 %v101
    %481 = vmatprep.subr.mxu0 0.0
    %482 = vmatpush1.msra.mxu0 %v100
    %483 = vmatprep.subr.mxu0 0.0
    %484 = vmatpush1.msra.mxu0 %v99
    %485 = vmatprep.subr.mxu0 0.0
    %486 = vmatpush1.msra.mxu0 %v98
    %487 = vmatprep.subr.mxu0 0.0
    %488 = vmatpush1.msra.mxu0 %v97
    %489 = vmatprep.subr.mxu0 0.0
    %490 = vmatpush1.msra.mxu0 %v96
    %491 = vmatprep.subr.mxu0 0.0
    %492 = vmatpush1.msra.mxu0 %v95
    %493 = vmatprep.subr.mxu0 0.0
    %494 = vmatpush2.msra.mxu0 %v126
    %495 = vmatprep.subr.mxu0 0.0
    %496 = vmatpush2.msra.mxu0 %v125
    %497 = vmatprep.subr.mxu0 0.0
    %498 = vmatpush2.msra.mxu0 %v124
    %499 = vmatprep.subr.mxu0 0.0
    %500 = vmatpush2.msra.mxu0 %v123
    %501 = vmatprep.subr.mxu0 0.0
    %502 = vmatpush2.msra.mxu0 %v122
    %503 = vmatprep.subr.mxu0 0.0
    %504 = vmatpush2.msra.mxu0 %v121
    %505 = vmatprep.subr.mxu0 0.0
    %506 = vmatpush2.msra.mxu0 %v120
    %507 = vmatprep.subr.mxu0 0.0
    %508 = vmatpush2.msra.mxu0 %v119
    %509 = vmatprep.subr.mxu0 0.0
    %510 = vmatpush2.msra.mxu0 %v118
    %511 = vmatprep.subr.mxu0 0.0
    %512 = vmatpush2.msra.mxu0 %v117
    %513 = vmatprep.subr.mxu0 0.0
    %514 = vmatpush2.msra.mxu0 %v116
    %515 = vmatprep.subr.mxu0 0.0
    %516 = vmatpush2.msra.mxu0 %v115
    %517 = vmatprep.subr.mxu0 0.0
    %518 = vmatpush2.msra.mxu0 %v114
    %519 = vmatprep.subr.mxu0 0.0
    %520 = vmatpush2.msra.mxu0 %v113
    %521 = vmatprep.subr.mxu0 0.0
    %522 = vmatpush2.msra.mxu0 %v112
    %523 = vmatprep.subr.mxu0 0.0
    %524 = vmatpush2.msra.mxu0 %v111
    %525 = vmatprep.mubr.f32.mxu0 %v221
    %526 = vmatmul.mubr.f32.gmra.mxu0 %v220
    %v527 = vpop.f32.mrf.mxu0
    %v528 = vadd.f32 %v453, %v527
    %v529 = vpop.f32.mrf.mxu0
    %530 = vmatprep.mubr.f32.mxu0 %v292
    %531 = vmatmul.mubr.f32.gmra.mxu0 %v291
    %v532 = vpop.f32.mrf.mxu0
    %v533 = vadd.f32 %v458, %v532
    %v534 = vpop.f32.mrf.mxu0
    %535 = vdwg.mxu0
    %536 = vmatprep.subr.mxu0 0.0
    %537 = vmatpush1.msra.mxu0 0.0
    %538 = vmatprep.subr.mxu0 0.0
    %539 = vmatpush1.msra.mxu0 0.0
    %540 = vmatprep.subr.mxu0 0.0
    %541 = vmatpush1.msra.mxu0 0.0
    %542 = vmatprep.subr.mxu0 0.0
    %543 = vmatpush1.msra.mxu0 0.0
    %544 = vmatprep.subr.mxu0 0.0
    %545 = vmatpush1.msra.mxu0 0.0
    %546 = vmatprep.subr.mxu0 0.0
    %547 = vmatpush1.msra.mxu0 0.0
    %548 = vmatprep.subr.mxu0 0.0
    %549 = vmatpush1.msra.mxu0 0.0
    %550 = vmatprep.subr.mxu0 0.0
    %551 = vmatpush1.msra.mxu0 0.0
    %552 = vmatprep.subr.mxu0 0.0
    %553 = vmatpush1.msra.mxu0 0.0
    %554 = vmatprep.subr.mxu0 0.0
    %555 = vmatpush1.msra.mxu0 0.0
    %556 = vmatprep.subr.mxu0 0.0
    %557 = vmatpush1.msra.mxu0 0.0
    %558 = vmatprep.subr.mxu0 0.0
    %559 = vmatpush1.msra.mxu0 0.0
    %560 = vmatprep.subr.mxu0 0.0
    %561 = vmatpush1.msra.mxu0 0.0
    %562 = vmatprep.subr.mxu0 0.0
    %563 = vmatpush1.msra.mxu0 0.0
    %564 = vmatprep.subr.mxu0 0.0
    %565 = vmatpush1.msra.mxu0 %v128
    %566 = vmatprep.subr.mxu0 0.0
    %567 = vmatpush1.msra.mxu0 %v127
    %568 = vmatprep.subr.mxu0 0.0
    %569 = vmatpush2.msra.mxu0 0.0
    %570 = vmatprep.subr.mxu0 0.0
    %571 = vmatpush2.msra.mxu0 0.0
    %572 = vmatprep.subr.mxu0 0.0
    %573 = vmatpush2.msra.mxu0 0.0
    %574 = vmatprep.subr.mxu0 0.0
    %575 = vmatpush2.msra.mxu0 0.0
    %576 = vmatprep.subr.mxu0 0.0
    %577 = vmatpush2.msra.mxu0 0.0
    %578 = vmatprep.subr.mxu0 0.0
    %579 = vmatpush2.msra.mxu0 0.0
    %580 = vmatprep.subr.mxu0 0.0
    %581 = vmatpush2.msra.mxu0 0.0
    %582 = vmatprep.subr.mxu0 0.0
    %583 = vmatpush2.msra.mxu0 0.0
    %584 = vmatprep.subr.mxu0 0.0
    %585 = vmatpush2.msra.mxu0 0.0
    %586 = vmatprep.subr.mxu0 0.0
    %587 = vmatpush2.msra.mxu0 0.0
    %588 = vmatprep.subr.mxu0 0.0
    %589 = vmatpush2.msra.mxu0 0.0
    %590 = vmatprep.subr.mxu0 0.0
    %591 = vmatpush2.msra.mxu0 0.0
    %592 = vmatprep.subr.mxu0 0.0
    %593 = vmatpush2.msra.mxu0 0.0
    %594 = vmatprep.subr.mxu0 0.0
    %595 = vmatpush2.msra.mxu0 0.0
    %596 = vmatprep.subr.mxu0 0.0
    %597 = vmatpush2.msra.mxu0 0.0
    %598 = vmatprep.subr.mxu0 0.0
    %599 = vmatpush2.msra.mxu0 0.0
    %600 = vmatprep.mubr.f32.mxu0 0.0
    %601 = vmatmul.mubr.f32.gmra.mxu0 %v307
    %v602 = vpop.f32.mrf.mxu0
    %v603 = vadd.f32 %v528, %v602
    %v604 = vpop.f32.mrf.mxu0
    %605 = vmatprep.mubr.f32.mxu0 0.0
    %606 = vmatmul.mubr.f32.gmra.mxu0 %v309
    %v607 = vpop.f32.mrf.mxu0
    %v608 = vadd.f32 %v533, %v607
    %v609 = vpop.f32.mrf.mxu0
    %610 = vdwg.mxu0
    %vm611 = vcmask 80896
    %v612 = vsel %vm611, %v603, -inf
    %613 = vmax.xlane.f32.xlu0 %v612
    %v614 = vpop.xlane.xlu0 %613
    %v615 = vsel %vm611, %v608, -inf
    %616 = vmax.xlane.f32.xlu0 %v615
    %v617 = vpop.xlane.xlu0 %616
    %v618 = vsub.f32 %v603, %v614
    %v619 = vsub.f32 %v608, %v617
    %v620 = vmul.f32 %v618, 1.442695
    %v621 = vpow.pop %v620
    %v622 = vmul.f32 %v619, 1.442695
    %v623 = vpow.pop %v622
    %v625 = vsel %vm611, %v621, 0
    %v628 = vsel %vm611, %v623, 0
    %vm630 = vcmask 1041408
    %v632 = vsel %vm630, 1.0, 0
    %634 = vmatprep.subr.mxu0 0.0
    %635 = vmatpush1.msra.mxu0 0.0
    %636 = vmatprep.subr.mxu0 0.0
    %637 = vmatpush1.msra.mxu0 0.0
    %638 = vmatprep.subr.mxu0 0.0
    %639 = vmatpush1.msra.mxu0 0.0
    %640 = vmatprep.subr.mxu0 0.0
    %641 = vmatpush1.msra.mxu0 0.0
    %642 = vmatprep.subr.mxu0 0.0
    %643 = vmatpush1.msra.mxu0 0.0
    %644 = vmatprep.subr.mxu0 0.0
    %645 = vmatpush1.msra.mxu0 0.0
    %646 = vmatprep.subr.mxu0 0.0
    %647 = vmatpush1.msra.mxu0 0.0
    %648 = vmatprep.subr.mxu0 0.0
    %649 = vmatpush1.msra.mxu0 0.0
    %650 = vmatprep.subr.mxu0 0.0
    %651 = vmatpush1.msra.mxu0 0.0
    %652 = vmatprep.subr.mxu0 0.0
    %653 = vmatpush1.msra.mxu0 0.0
    %654 = vmatprep.subr.mxu0 0.0
    %655 = vmatpush1.msra.mxu0 0.0
    %656 = vmatprep.subr.mxu0 0.0
    %657 = vmatpush1.msra.mxu0 0.0
    %658 = vmatprep.subr.mxu0 0.0
    %659 = vmatpush1.msra.mxu0 0.0
    %660 = vmatprep.subr.mxu0 0.0
    %661 = vmatpush1.msra.mxu0 0.0
    %662 = vmatprep.subr.mxu0 0.0
    %663 = vmatpush1.msra.mxu0 %v632
    %664 = vmatprep.subr.mxu0 0.0
    %665 = vmatpush1.msra.mxu0 1.0
    %666 = vmatprep.subr.mxu0 0.0
    %667 = vmatpush2.msra.mxu0 0.0
    %668 = vmatprep.subr.mxu0 0.0
    %669 = vmatpush2.msra.mxu0 0.0
    %670 = vmatprep.subr.mxu0 0.0
    %671 = vmatpush2.msra.mxu0 0.0
    %672 = vmatprep.subr.mxu0 0.0
    %673 = vmatpush2.msra.mxu0 0.0
    %674 = vmatprep.subr.mxu0 0.0
    %675 = vmatpush2.msra.mxu0 0.0
    %676 = vmatprep.subr.mxu0 0.0
    %677 = vmatpush2.msra.mxu0 0.0
    %678 = vmatprep.subr.mxu0 0.0
    %679 = vmatpush2.msra.mxu0 0.0
    %680 = vmatprep.subr.mxu0 0.0
    %681 = vmatpush2.msra.mxu0 0.0
    %682 = vmatprep.subr.mxu0 0.0
    %683 = vmatpush2.msra.mxu0 0.0
    %684 = vmatprep.subr.mxu0 0.0
    %685 = vmatpush2.msra.mxu0 0.0
    %686 = vmatprep.subr.mxu0 0.0
    %687 = vmatpush2.msra.mxu0 0.0
    %688 = vmatprep.subr.mxu0 0.0
    %689 = vmatpush2.msra.mxu0 0.0
    %690 = vmatprep.subr.mxu0 0.0
    %691 = vmatpush2.msra.mxu0 0.0
    %692 = vmatprep.subr.mxu0 0.0
    %693 = vmatpush2.msra.mxu0 0.0
    %694 = vmatprep.subr.mxu0 0.0
    %695 = vmatpush2.msra.mxu0 0.0
    %696 = vmatprep.subr.mxu0 0.0
    %697 = vmatpush2.msra.mxu0 0.0
    %698 = vmatprep.mubr.f32.mxu0 0.0
    %699 = vmatmul.mubr.f32.gmra.mxu0 %v625
    %v700 = vpop.f32.mrf.mxu0
    %v701 = vadd.f32 0.0, %v700
    %v702 = vpop.f32.mrf.mxu0
    %703 = vmatprep.mubr.f32.mxu0 0.0
    %704 = vmatmul.mubr.f32.gmra.mxu0 %v628
    %v705 = vpop.f32.mrf.mxu0
    %v706 = vadd.f32 0.0, %v705
    %v707 = vpop.f32.mrf.mxu0
    %708 = vdwg.mxu0
    %v709 = vlog2.pop %v701
    %v710 = vmul.f32 %v709, 0.6931472
    %v711 = vlog2.pop %v706
    %v712 = vmul.f32 %v711, 0.6931472
    %714 = vset.pattern.permute.xlu0 0
    %715 = vperm.xlu0 %714, %v710
    %v716 = vpop.permute.xlu0 %715
    %719 = vset.pattern.permute.xlu0 0
    %720 = vperm.xlu0 %719, %v712
    %v721 = vpop.permute.xlu0 %720
    %v723 = vsub.f32 %v618, %v716
    %v724 = vsub.f32 %v619, %v721
    %725 = vst.msk [vmem:[#allocation2] sm:$0xff] %vm611, %v723
    %726 = vst.msk [vmem:[#allocation2 + $0x8] sm:$0xff] %vm611, %v724
    // Predicated region
    $region14: #{tpu_custom_call.1} parent=1 // pred_check
      _
    $region15: #{tpu_custom_call.1} parent=1 // pred_check_branch
      %728 = sbr.rel (0) target = $region17
    $region16: #{tpu_custom_call.1} parent=1 // pred_region
      %s730 = ssub.s32 256, 32
      %731 = vsyncadd [#allocation3], %s730
      %s732 = sshll.u32 [#allocation2], 4
      %s733 = int_to_ptr.vmem [resolvable:$true] %s732
      %738 = dma.vmem_to_hbm [thread:$0]  %s733, 32, %s3, [#allocation3], 32, 32, 2
    $region17: #{tpu_custom_call.1} parent=1 // pred_fallthru
      _
    // Predicated region
    $region18: #{tpu_custom_call.1} parent=1 // pred_check
      _
    $region19: #{tpu_custom_call.1} parent=1 // pred_check_branch
      %740 = sbr.rel (0) target = $region21
    $region20: #{tpu_custom_call.1} parent=1 // pred_region
      %741 = dma.done [#allocation3], 256
    $region21: #{tpu_custom_call.1} parent=1 // pred_fallthru
      _
    %742 = vsyncpa [#allocation3], 1

</llo_original>
